<compile_context>
chip_gen: v6e
topology: v6e:2x2x1
jax: 0.10.0
libtpu: 0.0.40
codegen_flags: <defaults>
</compile_context>

<pallas_src>
import jax
import jax.numpy as jnp
from jax.experimental import pallas as pl
from jax.experimental.pallas import tpu as pltpu


def _round_up(x, m):
    return ((x + m - 1) // m) * m


def _scoring_kernel(h_ref, r_ref, t_ref, wh_ref, wr_ref, wt_ref, b_ref, o_ref):
    # Widen to f32 right after load (no-op for f32 inputs; keeps v5e off
    # non-existent bf16 VPU paths if inputs are ever bf16).
    h = h_ref[...].astype(jnp.float32)
    r = r_ref[...].astype(jnp.float32)
    t = t_ref[...].astype(jnp.float32)

    # VPU elementwise multiply/add with the (1, D) weight rows broadcast
    # across sublanes; no concat, no MXU.
    acc = h * wh_ref[...] + r * wr_ref[...] + t * wt_ref[...]      # (TM, D)

    # Lane reduction per row + scalar bias from SMEM.
    scores = jnp.sum(acc, axis=1) + b_ref[0]                       # (TM,)

    # Lane-dense store: one (1, TM) row per grid step.
    o_ref[...] = scores[None, :]


def linear_scoring_function(h, r, t, weight, bias, *, block_rows=512):
    """h, r, t: (B, D). weight: (1, 3*D) (nn.Linear layout). bias: (1,).

    Returns (B, 1), matching torch.cat([h, r, t], dim=1) @ weight.T + bias.
    """
    B, D = h.shape
    assert r.shape == (B, D) and t.shape == (B, D)
    assert weight.shape == (1, 3 * D) and bias.shape == (1,)
    assert block_rows % 128 == 0, "block_rows must be a multiple of 128"

    # Split the weight so no concatenation is needed inside the kernel.
    w_h = weight[:, :D]
    w_r = weight[:, D:2 * D]
    w_t = weight[:, 2 * D:]

    # Batch tiling: TM rows per grid step. TM is a multiple of 8; when more
    # than one tile is used TM == block_rows (multiple of 128) so the
    # lane-dense output block stays aligned.
    tm = min(block_rows, _round_up(B, 8))
    b_pad = _round_up(B, tm)
    if b_pad != B:
        pad = ((0, b_pad - B), (0, 0))
        h = jnp.pad(h, pad)
        r = jnp.pad(r, pad)
        t = jnp.pad(t, pad)
    n_tiles = b_pad // tm

    in_block = pl.BlockSpec((tm, D), lambda i: (i, 0))
    w_block = pl.BlockSpec((1, D), lambda i: (0, 0))   # resident across grid

    out = pl.pallas_call(
        _scoring_kernel,
        out_shape=jax.ShapeDtypeStruct((1, b_pad), jnp.float32),
        grid=(n_tiles,),
        in_specs=[
            in_block, in_block, in_block,          # h, r, t tiles
            w_block, w_block, w_block,             # w_h, w_r, w_t rows
            pl.BlockSpec(memory_space=pltpu.MemorySpace.SMEM),   # bias scalar
        ],
        out_specs=pl.BlockSpec((1, tm), lambda i: (0, i)),
        compiler_params=pltpu.CompilerParams(
            dimension_semantics=("parallel",)),
    )(h, r, t, w_h, w_r, w_t, bias)

    # Back to the PyTorch (B, 1) shape (drop padded rows).
    return out[0, :B][:, None]


if __name__ == "__main__":
    key = jax.random.PRNGKey(0)
    B = 256            # batch of (h, r, t) triples
    D = 32             # embedding_dim

    k_h, k_r, k_t, k_w, k_b = jax.random.split(key, 5)
    h = jax.random.normal(k_h, (B, D), dtype=jnp.float32)
    r = jax.random.normal(k_r, (B, D), dtype=jnp.float32)
    t = jax.random.normal(k_t, (B, D), dtype=jnp.float32)

    # Deterministic nn.Linear(3*D, 1) parameters in PyTorch layout:
    # weight (out_features=1, in_features=3*D), bias (1,).
    bound = 1.0 / jnp.sqrt(3.0 * D)
    weight = jax.random.uniform(k_w, (1, 3 * D), dtype=jnp.float32,
                                minval=-bound, maxval=bound)
    bias = jax.random.uniform(k_b, (1,), dtype=jnp.float32,
                              minval=-bound, maxval=bound)

    # block_rows=128 keeps the demo tiny while still exercising a 2-step grid.
    out = linear_scoring_function(h, r, t, weight, bias, block_rows=128)
    out = jax.block_until_ready(out)

    # Pure-JAX reference of the forward semantics.
    x = jnp.concatenate([h, r, t], axis=1)
    ref = jnp.dot(x, weight.T, precision=jax.lax.Precision.HIGHEST) + bias
    assert out.shape == (B, 1)
    assert jnp.allclose(out, ref, atol=1e-5, rtol=1e-5)

    print("KERNEL_OK")
</pallas_src>

<mosaic_0001>
module attributes {stable_mosaic.version = 11 : i64} {
  func.func @_scoring_kernel(%arg0: i32, %arg1: memref<128x32xf32, #tpu.memory_space<vmem>>, %arg2: memref<128x32xf32, #tpu.memory_space<vmem>>, %arg3: memref<128x32xf32, #tpu.memory_space<vmem>>, %arg4: memref<1x32xf32, #tpu.memory_space<vmem>>, %arg5: memref<1x32xf32, #tpu.memory_space<vmem>>, %arg6: memref<1x32xf32, #tpu.memory_space<vmem>>, %arg7: memref<1xf32, #tpu.memory_space<smem>>, %arg8: memref<1x128xf32, #tpu.memory_space<vmem>>) attributes {dimension_semantics = [#tpu.dimension_semantics<parallel>], iteration_bounds = array<i64: 2>, scalar_prefetch = 0 : i64, scratch_operands = 0 : i64, tpu.core_type = #tpu.core_type<tc>, window_params = [{transform_indices = @transform_0, window_bounds = array<i64: 128, 32>}, {transform_indices = @transform_1, window_bounds = array<i64: 128, 32>}, {transform_indices = @transform_2, window_bounds = array<i64: 128, 32>}, {pipeline_mode = #tpu.pipeline_mode<synchronous>, transform_indices = @transform_3, window_bounds = array<i64: 1, 32>}, {pipeline_mode = #tpu.pipeline_mode<synchronous>, transform_indices = @transform_4, window_bounds = array<i64: 1, 32>}, {pipeline_mode = #tpu.pipeline_mode<synchronous>, transform_indices = @transform_5, window_bounds = array<i64: 1, 32>}, {transform_indices = @transform_6, window_bounds = array<i64: 1>}, {transform_indices = @transform_7, window_bounds = array<i64: 1, 128>}]} {
    %c0 = arith.constant 0 : index
    %c0_0 = arith.constant 0 : index
    %0 = vector.load %arg1[%c0, %c0_0] : memref<128x32xf32, #tpu.memory_space<vmem>>, vector<128x32xf32>
    %c0_1 = arith.constant 0 : index
    %c0_2 = arith.constant 0 : index
    %1 = vector.load %arg2[%c0_1, %c0_2] : memref<128x32xf32, #tpu.memory_space<vmem>>, vector<128x32xf32>
    %c0_3 = arith.constant 0 : index
    %c0_4 = arith.constant 0 : index
    %2 = vector.load %arg3[%c0_3, %c0_4] : memref<128x32xf32, #tpu.memory_space<vmem>>, vector<128x32xf32>
    %c0_5 = arith.constant 0 : index
    %c0_6 = arith.constant 0 : index
    %3 = vector.load %arg4[%c0_5, %c0_6] : memref<1x32xf32, #tpu.memory_space<vmem>>, vector<1x32xf32>
    %4 = vector.broadcast %3 : vector<1x32xf32> to vector<128x32xf32>
    %5 = arith.mulf %0, %4 : vector<128x32xf32>
    %c0_7 = arith.constant 0 : index
    %c0_8 = arith.constant 0 : index
    %6 = vector.load %arg5[%c0_7, %c0_8] : memref<1x32xf32, #tpu.memory_space<vmem>>, vector<1x32xf32>
    %7 = vector.broadcast %6 : vector<1x32xf32> to vector<128x32xf32>
    %8 = arith.mulf %1, %7 : vector<128x32xf32>
    %9 = arith.addf %5, %8 : vector<128x32xf32>
    %c0_9 = arith.constant 0 : index
    %c0_10 = arith.constant 0 : index
    %10 = vector.load %arg6[%c0_9, %c0_10] : memref<1x32xf32, #tpu.memory_space<vmem>>, vector<1x32xf32>
    %11 = vector.broadcast %10 : vector<1x32xf32> to vector<128x32xf32>
    %12 = arith.mulf %2, %11 : vector<128x32xf32>
    %13 = arith.addf %9, %12 : vector<128x32xf32>
    %cst = arith.constant dense<0.000000e+00> : vector<128xf32>
    %14 = vector.multi_reduction <add>, %13, %cst [1] : vector<128x32xf32> to vector<128xf32>
    %c0_11 = arith.constant 0 : index
    %15 = memref.load %arg7[%c0_11] : memref<1xf32, #tpu.memory_space<smem>>
    %16 = vector.broadcast %15 : f32 to vector<128xf32>
    %17 = arith.addf %14, %16 : vector<128xf32>
    %18 = vector.shape_cast %17 : vector<128xf32> to vector<1x128xf32>
    %c0_12 = arith.constant 0 : index
    %c0_13 = arith.constant 0 : index
    %19 = vector.load %arg8[%c0_12, %c0_13] : memref<1x128xf32, #tpu.memory_space<vmem>>, vector<1x128xf32>
    tpu.vector_store %arg8[%c0_12, %c0_13], %18 {strides = array<i32>} : memref<1x128xf32, #tpu.memory_space<vmem>>, vector<1x128xf32>,
    return
  }
  func.func @transform_0(%arg0: i32) -> (i32, i32) {
    %c0_i32 = arith.constant 0 : i32
    %c0_i32_0 = arith.constant 0 : i32
    return %arg0, %c0_i32 : i32, i32
  }
  func.func @transform_1(%arg0: i32) -> (i32, i32) {
    %c0_i32 = arith.constant 0 : i32
    %c0_i32_0 = arith.constant 0 : i32
    return %arg0, %c0_i32 : i32, i32
  }
  func.func @transform_2(%arg0: i32) -> (i32, i32) {
    %c0_i32 = arith.constant 0 : i32
    %c0_i32_0 = arith.constant 0 : i32
    return %arg0, %c0_i32 : i32, i32
  }
  func.func @transform_3(%arg0: i32) -> (i32, i32) {
    %c0_i32 = arith.constant 0 : i32
    %c0_i32_0 = arith.constant 0 : i32
    %c0_i32_1 = arith.constant 0 : i32
    return %c0_i32, %c0_i32_0 : i32, i32
  }
  func.func @transform_4(%arg0: i32) -> (i32, i32) {
    %c0_i32 = arith.constant 0 : i32
    %c0_i32_0 = arith.constant 0 : i32
    %c0_i32_1 = arith.constant 0 : i32
    return %c0_i32, %c0_i32_0 : i32, i32
  }
  func.func @transform_5(%arg0: i32) -> (i32, i32) {
    %c0_i32 = arith.constant 0 : i32
    %c0_i32_0 = arith.constant 0 : i32
    %c0_i32_1 = arith.constant 0 : i32
    return %c0_i32, %c0_i32_0 : i32, i32
  }
  func.func @transform_6(%arg0: i32) -> i32 {
    %c0_i32 = arith.constant 0 : i32
    %c0_i32_0 = arith.constant 0 : i32
    return %c0_i32 : i32
  }
  func.func @transform_7(%arg0: i32) -> (i32, i32) {
    %c0_i32 = arith.constant 0 : i32
    %c0_i32_0 = arith.constant 0 : i32
    return %c0_i32, %arg0 : i32, i32
  }
}

</mosaic_0001>

<llo_original>
// kernel: tpu_custom_call.1
$region0: #{tpu_custom_call.1}
  #allocation0 [shape = 'u32[]', space=smem, size = 0x4, offset = 0x4, fixed_abs, tag = 'smem constant byte address 0x4 - core index']
  #allocation1 [shape = 'u32[144,128]{1,0:T(1,128)}', space=vmem, size = 0x12000, scoped, tag = 'internal scratch']
  #allocation2 [shape = 'f32[1]{0:T(128)S(6)}', space=smem, size = 0x200, scoped, tag = 'scoped memory for tpu_custom_call.1']
  %s0 = inlined_call_operand.vmem [shape: f32[256,32], index: 0, kind: input, shape index: {}]
  %s1 = inlined_call_operand.vmem [shape: f32[256,32], index: 1, kind: input, shape index: {}]
  %s2 = inlined_call_operand.vmem [shape: f32[256,32], index: 2, kind: input, shape index: {}]
  %s3 = inlined_call_operand.vmem [shape: f32[1,32], index: 3, kind: input, shape index: {}]
  %s4 = inlined_call_operand.vmem [shape: f32[1,32], index: 4, kind: input, shape index: {}]
  %s5 = inlined_call_operand.vmem [shape: f32[1,32], index: 5, kind: input, shape index: {}]
  %s6 = inlined_call_operand.<no memory space> [shape: f32[1], index: 6, kind: input, shape index: {}]
  %s7 = inlined_call_operand.hbm [shape: f32[1,256], index: 7, kind: output, shape index: {}]
  %s8 = sld [smem:[#allocation0]]
  $region61: #{tpu_custom_call.1} parent=0
    _
  %s10 = ssub.s32 1, %s8
  %s11 = scalar_select 0, %s10, %s8
  %12 = sst [smem:[#allocation2]] %s6
  $region1: #{tpu_custom_call.1} parent=0
    #allocation3 [shape = 'u8[1024]{0}', space=vmem, size = 0x400, scoped, tag = 'output window, operand 0']
    #allocation4 [shape = 's32[2]{0}', space=sflag, size = 0x8, scoped, tag = 'scoped memory for tpu_custom_call.1']
    %13 = vsyncpa [#allocation4], 0
    %s14 = scalar_lea.sflag [#allocation4], 1
    %15 = vsyncpa %s14, 0
    loop: start=0, step=1, limit=4
    $region2: #{tpu_custom_call.1} parent=1 // loop_pre_header
      _
    $region3: #{tpu_custom_call.1} parent=1 // loop_header
      %s17 = sphi 0, %s21
      %p18 = scmp.ge.s32.totalorder %s17, 4
      %s27 = sphi 0, %s29
      %s30 = sphi 0, %s27
      %s31 = sphi 0, %s30
      %s47 = sphi 0, %s31
      %s53 = sphi 0, %s55
      %s56 = sphi 0, %s53
      %s57 = sphi 0, %s56
      %s73 = sphi 0, %s57
      %s79 = sphi 0, %s81
      %s82 = sphi 0, %s79
      %s83 = sphi 0, %s82
      %s99 = sphi 0, %s83
      %s103 = sphi 0, %s103
      %s105 = sphi 0, %s103
      %s106 = sphi 0, %s105
      %s120 = sphi 0, %s106
      %s124 = sphi 0, %s124
      %s126 = sphi 0, %s124
      %s127 = sphi 0, %s126
      %s141 = sphi 0, %s127
      %s145 = sphi 0, %s145
      %s147 = sphi 0, %s145
      %s148 = sphi 0, %s147
      %s162 = sphi 0, %s148
      %s166 = sphi 0, %s166
      %s168 = sphi 0, %s166
      %s169 = sphi 0, %s168
      %s183 = sphi 0, %s169
      %s189 = sphi 0, %s191
      %s192 = sphi 0, %s189
      %s193 = sphi 0, %s192
      %s209 = sphi 0, %s193
    $region4: #{tpu_custom_call.1} parent=1 // loop_header_branch
      %20 = sbr.rel (%p18) target = $region8
    $region5: #{tpu_custom_call.1} parent=1 // loop_body
      %s22 = ssub.s32 %s17, 1
      %s23 = ssub.s32 %s17, 2
      %s24 = sadd.s32 %s17, 1
      %s25 = ssub.s32 %s17, %s24
      %p26 = scmp.eq.s32.totalorder %s25, 0
      %s28 = sadd.s32 %s27, 1
      %s29 = scalar_select %p26, %s27, %s28
      %p32 = pneg %p26
      %p33 = scmp.eq.s32.totalorder %s17, 1
      %p34 = por %p32, %p33
      %p35 = scmp.ne.s32.totalorder %s27, %s30
      %p36 = scmp.eq.s32.totalorder %s17, 0
      %p37 = por %p35, %p36
      %p38 = scmp.ne.s32.totalorder %s27, %s30
      %p39 = scmp.eq.s32.totalorder %s22, 1
      %p40 = por %p38, %p39
      %p41 = scmp.ne.s32.totalorder %s30, %s31
      %p42 = scmp.eq.s32.totalorder %s22, 0
      %p43 = por %p41, %p42
      %p44 = scmp.ne.s32.totalorder %s30, %s31
      %p45 = scmp.eq.s32.totalorder %s23, 1
      %p46 = por %p44, %p45
      %p48 = scmp.ne.s32.totalorder %s31, %s47
      %p49 = scmp.eq.s32.totalorder %s23, 0
      %p50 = por %p48, %p49
      %s51 = ssub.s32 %s17, %s24
      %p52 = scmp.eq.s32.totalorder %s51, 0
      %s54 = sadd.s32 %s53, 1
      %s55 = scalar_select %p52, %s53, %s54
      %p58 = pneg %p52
      %p59 = scmp.eq.s32.totalorder %s17, 1
      %p60 = por %p58, %p59
      %p61 = scmp.ne.s32.totalorder %s53, %s56
      %p62 = scmp.eq.s32.totalorder %s17, 0
      %p63 = por %p61, %p62
      %p64 = scmp.ne.s32.totalorder %s53, %s56
      %p65 = scmp.eq.s32.totalorder %s22, 1
      %p66 = por %p64, %p65
      %p67 = scmp.ne.s32.totalorder %s56, %s57
      %p68 = scmp.eq.s32.totalorder %s22, 0
      %p69 = por %p67, %p68
      %p70 = scmp.ne.s32.totalorder %s56, %s57
      %p71 = scmp.eq.s32.totalorder %s23, 1
      %p72 = por %p70, %p71
      %p74 = scmp.ne.s32.totalorder %s57, %s73
      %p75 = scmp.eq.s32.totalorder %s23, 0
      %p76 = por %p74, %p75
      %s77 = ssub.s32 %s17, %s24
      %p78 = scmp.eq.s32.totalorder %s77, 0
      %s80 = sadd.s32 %s79, 1
      %s81 = scalar_select %p78, %s79, %s80
      %p84 = pneg %p78
      %p85 = scmp.eq.s32.totalorder %s17, 1
      %p86 = por %p84, %p85
      %p87 = scmp.ne.s32.totalorder %s79, %s82
      %p88 = scmp.eq.s32.totalorder %s17, 0
      %p89 = por %p87, %p88
      %p90 = scmp.ne.s32.totalorder %s79, %s82
      %p91 = scmp.eq.s32.totalorder %s22, 1
      %p92 = por %p90, %p91
      %p93 = scmp.ne.s32.totalorder %s82, %s83
      %p94 = scmp.eq.s32.totalorder %s22, 0
      %p95 = por %p93, %p94
      %p96 = scmp.ne.s32.totalorder %s82, %s83
      %p97 = scmp.eq.s32.totalorder %s23, 1
      %p98 = por %p96, %p97
      %p100 = scmp.ne.s32.totalorder %s83, %s99
      %p101 = scmp.eq.s32.totalorder %s23, 0
      %p102 = por %p100, %p101
      %s104 = sadd.s32 %s103, 1
      %p107 = scmp.eq.s32.totalorder %s17, 1
      %p108 = scmp.ne.s32.totalorder %s103, %s105
      %p109 = scmp.eq.s32.totalorder %s17, 0
      %p110 = por %p108, %p109
      %p111 = scmp.ne.s32.totalorder %s103, %s105
      %p112 = scmp.eq.s32.totalorder %s22, 1
      %p113 = por %p111, %p112
      %p114 = scmp.ne.s32.totalorder %s105, %s106
      %p115 = scmp.eq.s32.totalorder %s22, 0
      %p116 = por %p114, %p115
      %p117 = scmp.ne.s32.totalorder %s105, %s106
      %p118 = scmp.eq.s32.totalorder %s23, 1
      %p119 = por %p117, %p118
      %p121 = scmp.ne.s32.totalorder %s106, %s120
      %p122 = scmp.eq.s32.totalorder %s23, 0
      %p123 = por %p121, %p122
      %s125 = sadd.s32 %s124, 1
      %p128 = scmp.eq.s32.totalorder %s17, 1
      %p129 = scmp.ne.s32.totalorder %s124, %s126
      %p130 = scmp.eq.s32.totalorder %s17, 0
      %p131 = por %p129, %p130
      %p132 = scmp.ne.s32.totalorder %s124, %s126
      %p133 = scmp.eq.s32.totalorder %s22, 1
      %p134 = por %p132, %p133
      %p135 = scmp.ne.s32.totalorder %s126, %s127
      %p136 = scmp.eq.s32.totalorder %s22, 0
      %p137 = por %p135, %p136
      %p138 = scmp.ne.s32.totalorder %s126, %s127
      %p139 = scmp.eq.s32.totalorder %s23, 1
      %p140 = por %p138, %p139
      %p142 = scmp.ne.s32.totalorder %s127, %s141
      %p143 = scmp.eq.s32.totalorder %s23, 0
      %p144 = por %p142, %p143
      %s146 = sadd.s32 %s145, 1
      %p149 = scmp.eq.s32.totalorder %s17, 1
      %p150 = scmp.ne.s32.totalorder %s145, %s147
      %p151 = scmp.eq.s32.totalorder %s17, 0
      %p152 = por %p150, %p151
      %p153 = scmp.ne.s32.totalorder %s145, %s147
      %p154 = scmp.eq.s32.totalorder %s22, 1
      %p155 = por %p153, %p154
      %p156 = scmp.ne.s32.totalorder %s147, %s148
      %p157 = scmp.eq.s32.totalorder %s22, 0
      %p158 = por %p156, %p157
      %p159 = scmp.ne.s32.totalorder %s147, %s148
      %p160 = scmp.eq.s32.totalorder %s23, 1
      %p161 = por %p159, %p160
      %p163 = scmp.ne.s32.totalorder %s148, %s162
      %p164 = scmp.eq.s32.totalorder %s23, 0
      %p165 = por %p163, %p164
      %s167 = sadd.s32 %s166, 1
      %p170 = scmp.eq.s32.totalorder %s17, 1
      %p171 = scmp.ne.s32.totalorder %s166, %s168
      %p172 = scmp.eq.s32.totalorder %s17, 0
      %p173 = por %p171, %p172
      %p174 = scmp.ne.s32.totalorder %s166, %s168
      %p175 = scmp.eq.s32.totalorder %s22, 1
      %p176 = por %p174, %p175
      %p177 = scmp.ne.s32.totalorder %s168, %s169
      %p178 = scmp.eq.s32.totalorder %s22, 0
      %p179 = por %p177, %p178
      %p180 = scmp.ne.s32.totalorder %s168, %s169
      %p181 = scmp.eq.s32.totalorder %s23, 1
      %p182 = por %p180, %p181
      %p184 = scmp.ne.s32.totalorder %s169, %s183
      %p185 = scmp.eq.s32.totalorder %s23, 0
      %p186 = por %p184, %p185
      %s187 = ssub.s32 %s17, %s24
      %p188 = scmp.eq.s32.totalorder %s187, 0
      %s190 = sadd.s32 %s189, 1
      %s191 = scalar_select %p188, %s189, %s190
      %p194 = pneg %p188
      %p195 = scmp.eq.s32.totalorder %s17, 1
      %p196 = por %p194, %p195
      %p197 = scmp.ne.s32.totalorder %s189, %s192
      %p198 = scmp.eq.s32.totalorder %s17, 0
      %p199 = por %p197, %p198
      %p200 = scmp.ne.s32.totalorder %s189, %s192
      %p201 = scmp.eq.s32.totalorder %s22, 1
      %p202 = por %p200, %p201
      %p203 = scmp.ne.s32.totalorder %s192, %s193
      %p204 = scmp.eq.s32.totalorder %s22, 0
      %p205 = por %p203, %p204
      %p206 = scmp.ne.s32.totalorder %s192, %s193
      %p207 = scmp.eq.s32.totalorder %s23, 1
      %p208 = por %p206, %p207
      %p210 = scmp.ne.s32.totalorder %s193, %s209
      %p211 = scmp.eq.s32.totalorder %s23, 0
      %p212 = por %p210, %p211
      %p213 = scmp.le.s32.totalorder 1, %s17
      %p214 = scmp.lt.s32.totalorder %s17, 3
      %p215 = pnand %p213, %p214
      %p216 = pneg %p215
      // Predicated region
      $region9: #{tpu_custom_call.1} parent=5 // pred_check
        _
      $region10: #{tpu_custom_call.1} parent=5 // pred_check_branch
        %218 = sbr.rel (%p215) target = $region12
      $region11: #{tpu_custom_call.1} parent=5 // pred_region
        %s219 = ssub.s32 %s17, 1
        // Predicated region
        $region13: #{tpu_custom_call.1} parent=11 // pred_check
          %p220 = pneg %p116
        $region14: #{tpu_custom_call.1} parent=11 // pred_check_branch
          %222 = sbr.rel (%p220) target = $region16
        $region15: #{tpu_custom_call.1} parent=11 // pred_region
          _
        $region16: #{tpu_custom_call.1} parent=11 // pred_fallthru
          _
        // Predicated region
        $region17: #{tpu_custom_call.1} parent=11 // pred_check
          %p223 = pneg %p137
        $region18: #{tpu_custom_call.1} parent=11 // pred_check_branch
          %225 = sbr.rel (%p223) target = $region20
        $region19: #{tpu_custom_call.1} parent=11 // pred_region
          _
        $region20: #{tpu_custom_call.1} parent=11 // pred_fallthru
          _
        // Predicated region
        $region21: #{tpu_custom_call.1} parent=11 // pred_check
          %p226 = pneg %p158
        $region22: #{tpu_custom_call.1} parent=11 // pred_check_branch
          %228 = sbr.rel (%p226) target = $region24
        $region23: #{tpu_custom_call.1} parent=11 // pred_region
          _
        $region24: #{tpu_custom_call.1} parent=11 // pred_fallthru
          _
        // Predicated region
        $region25: #{tpu_custom_call.1} parent=11 // pred_check
          %p229 = pneg %p179
        $region26: #{tpu_custom_call.1} parent=11 // pred_check_branch
          %231 = sbr.rel (%p229) target = $region28
        $region27: #{tpu_custom_call.1} parent=11 // pred_region
          _
        $region28: #{tpu_custom_call.1} parent=11 // pred_fallthru
          _
      $region12: #{tpu_custom_call.1} parent=5 // pred_fallthru
        _
      %p232 = scmp.lt.s32.totalorder %s17, 2
      // Predicated region
      $region29: #{tpu_custom_call.1} parent=5 // pred_check
        %p233 = pneg %p232
      $region30: #{tpu_custom_call.1} parent=5 // pred_check_branch
        %235 = sbr.rel (%p233) target = $region32
      $region31: #{tpu_custom_call.1} parent=5 // pred_region
        // Predicated region
        $region33: #{tpu_custom_call.1} parent=31 // pred_check
          %p236 = pneg %p37
        $region34: #{tpu_custom_call.1} parent=31 // pred_check_branch
          %238 = sbr.rel (%p236) target = $region36
        $region35: #{tpu_custom_call.1} parent=31 // pred_region
          %s239 = smul.u32 16, %s17
          %p240 = scmp.lt.s32.totalorder %s239, 31
          %s241 = scalar_select %p240, %s239, 31
          %s242 = smul.addr %s241, 8
          %s243 = scalar_lea.vmem %s0, %s242
          %s244 = smul.u32 16, %s17
        $region36: #{tpu_custom_call.1} parent=31 // pred_fallthru
          _
        // Predicated region
        $region37: #{tpu_custom_call.1} parent=31 // pred_check
          %p245 = pneg %p63
        $region38: #{tpu_custom_call.1} parent=31 // pred_check_branch
          %247 = sbr.rel (%p245) target = $region40
        $region39: #{tpu_custom_call.1} parent=31 // pred_region
          %s248 = smul.u32 16, %s17
          %p249 = scmp.lt.s32.totalorder %s248, 31
          %s250 = scalar_select %p249, %s248, 31
          %s251 = smul.addr %s250, 8
          %s252 = scalar_lea.vmem %s1, %s251
          %s253 = smul.u32 16, %s17
        $region40: #{tpu_custom_call.1} parent=31 // pred_fallthru
          _
        // Predicated region
        $region41: #{tpu_custom_call.1} parent=31 // pred_check
          %p254 = pneg %p89
        $region42: #{tpu_custom_call.1} parent=31 // pred_check_branch
          %256 = sbr.rel (%p254) target = $region44
        $region43: #{tpu_custom_call.1} parent=31 // pred_region
          %s257 = smul.u32 16, %s17
          %p258 = scmp.lt.s32.totalorder %s257, 31
          %s259 = scalar_select %p258, %s257, 31
          %s260 = smul.addr %s259, 8
          %s261 = scalar_lea.vmem %s2, %s260
          %s262 = smul.u32 16, %s17
        $region44: #{tpu_custom_call.1} parent=31 // pred_fallthru
          _
      $region32: #{tpu_custom_call.1} parent=5 // pred_fallthru
        _
      %p263 = scmp.le.s32.totalorder 1, %s17
      %p264 = scmp.lt.s32.totalorder %s17, 3
      %p265 = pnand %p263, %p264
      %p266 = pneg %p265
      // Predicated region
      $region45: #{tpu_custom_call.1} parent=5 // pred_check
        _
      $region46: #{tpu_custom_call.1} parent=5 // pred_check_branch
        %268 = sbr.rel (%p265) target = $region48
      $region47: #{tpu_custom_call.1} parent=5 // pred_region
        %s269 = ssub.s32 %s17, 1
        %s270 = smul.u32 16, %s22
        %p271 = scmp.lt.s32.totalorder %s270, 31
        %s272 = scalar_select %p271, %s270, 31
        %s273 = smul.addr %s272, 8
        %s274 = scalar_lea.vmem %s0, %s273
        %p275 = pneg %p43
        %p276 = pneg %p40
        %s277 = smul.u32 16, %s22
        %p278 = scmp.lt.s32.totalorder %s277, 31
        %s279 = scalar_select %p278, %s277, 31
        %s280 = smul.addr %s279, 8
        %s281 = scalar_lea.vmem %s1, %s280
        %p282 = pneg %p69
        %p283 = pneg %p66
        %s284 = smul.u32 16, %s22
        %p285 = scmp.lt.s32.totalorder %s284, 31
        %s286 = scalar_select %p285, %s284, 31
        %s287 = smul.addr %s286, 8
        %s288 = scalar_lea.vmem %s2, %s287
        %p289 = pneg %p95
        %p290 = pneg %p92
        %p291 = pneg %p116
        %p292 = pneg %p113
        %p293 = pneg %p137
        %p294 = pneg %p134
        %p295 = pneg %p158
        %p296 = pneg %p155
        %p297 = pneg %p179
        %p298 = pneg %p176
        %p299 = pneg %p205
        %p300 = pneg %p202
        %s301 = sand.u32 %s192, 1
        %s302 = scalar_lea.sflag [#allocation4], %s301
        %s303 = sand.u32 %s192, 1
        %s304 = scalar_lea.vmem [#allocation3], %s303
        %s305 = smul.u32 16, %s22
        %p306 = scmp.lt.s32.totalorder %s305, 31
        %s307 = scalar_select %p306, %s305, 31
        %s308 = smul.addr %s307, 8
        %s309 = scalar_lea.vmem %s0, %s308
        %s310 = smul.u32 16, %s22
        %s311 = smul.u32 16, %s22
        %p312 = scmp.lt.s32.totalorder %s311, 31
        %s313 = scalar_select %p312, %s311, 31
        %s314 = smul.addr %s313, 8
        %s315 = scalar_lea.vmem %s1, %s314
        %s316 = smul.u32 16, %s22
        %s317 = smul.u32 16, %s22
        %p318 = scmp.lt.s32.totalorder %s317, 31
        %s319 = scalar_select %p318, %s317, 31
        %s320 = smul.addr %s319, 8
        %s321 = scalar_lea.vmem %s2, %s320
        %s322 = smul.u32 16, %s22
        %v323 = vld [vmem:[%s309] sm:$0xff]
        %v324 = vld [vmem:[%s309 + $0x8] sm:$0xff]
        %v325 = vld [vmem:[%s309 + $0x10] sm:$0xff]
        %v326 = vld [vmem:[%s309 + $0x18] sm:$0xff]
        %v327 = vld [vmem:[%s309 + $0x20] sm:$0xff]
        %v328 = vld [vmem:[%s309 + $0x28] sm:$0xff]
        %v329 = vld [vmem:[%s309 + $0x30] sm:$0xff]
        %v330 = vld [vmem:[%s309 + $0x38] sm:$0xff]
        %v331 = vld [vmem:[%s309 + $0x40] sm:$0xff]
        %v332 = vld [vmem:[%s309 + $0x48] sm:$0xff]
        %v333 = vld [vmem:[%s309 + $0x50] sm:$0xff]
        %v334 = vld [vmem:[%s309 + $0x58] sm:$0xff]
        %v335 = vld [vmem:[%s309 + $0x60] sm:$0xff]
        %v336 = vld [vmem:[%s309 + $0x68] sm:$0xff]
        %v337 = vld [vmem:[%s309 + $0x70] sm:$0xff]
        %v338 = vld [vmem:[%s309 + $0x78] sm:$0xff]
        %v339 = vld [vmem:[%s315] sm:$0xff]
        %v340 = vld [vmem:[%s315 + $0x8] sm:$0xff]
        %v341 = vld [vmem:[%s315 + $0x10] sm:$0xff]
        %v342 = vld [vmem:[%s315 + $0x18] sm:$0xff]
        %v343 = vld [vmem:[%s315 + $0x20] sm:$0xff]
        %v344 = vld [vmem:[%s315 + $0x28] sm:$0xff]
        %v345 = vld [vmem:[%s315 + $0x30] sm:$0xff]
        %v346 = vld [vmem:[%s315 + $0x38] sm:$0xff]
        %v347 = vld [vmem:[%s315 + $0x40] sm:$0xff]
        %v348 = vld [vmem:[%s315 + $0x48] sm:$0xff]
        %v349 = vld [vmem:[%s315 + $0x50] sm:$0xff]
        %v350 = vld [vmem:[%s315 + $0x58] sm:$0xff]
        %v351 = vld [vmem:[%s315 + $0x60] sm:$0xff]
        %v352 = vld [vmem:[%s315 + $0x68] sm:$0xff]
        %v353 = vld [vmem:[%s315 + $0x70] sm:$0xff]
        %v354 = vld [vmem:[%s315 + $0x78] sm:$0xff]
        %v355 = vld [vmem:[%s321] sm:$0xff]
        %v356 = vld [vmem:[%s321 + $0x8] sm:$0xff]
        %v357 = vld [vmem:[%s321 + $0x10] sm:$0xff]
        %v358 = vld [vmem:[%s321 + $0x18] sm:$0xff]
        %v359 = vld [vmem:[%s321 + $0x20] sm:$0xff]
        %v360 = vld [vmem:[%s321 + $0x28] sm:$0xff]
        %v361 = vld [vmem:[%s321 + $0x30] sm:$0xff]
        %v362 = vld [vmem:[%s321 + $0x38] sm:$0xff]
        %v363 = vld [vmem:[%s321 + $0x40] sm:$0xff]
        %v364 = vld [vmem:[%s321 + $0x48] sm:$0xff]
        %v365 = vld [vmem:[%s321 + $0x50] sm:$0xff]
        %v366 = vld [vmem:[%s321 + $0x58] sm:$0xff]
        %v367 = vld [vmem:[%s321 + $0x60] sm:$0xff]
        %v368 = vld [vmem:[%s321 + $0x68] sm:$0xff]
        %v369 = vld [vmem:[%s321 + $0x70] sm:$0xff]
        %v370 = vld [vmem:[%s321 + $0x78] sm:$0xff]
        %v371 = vld [vmem:[%s3] sm:$0x1]
        %v373 = vlaneseq
        %v374 = vshrl.u32 %v373, 7
        %v375 = vsub.s32 0, %v374
        %v376 = vrot.slane %v371, %v375
        %v378 = vmul.f32 %v323, %v376
        %v379 = vmul.f32 %v324, %v376
        %v380 = vmul.f32 %v325, %v376
        %v381 = vmul.f32 %v326, %v376
        %v382 = vmul.f32 %v327, %v376
        %v383 = vmul.f32 %v328, %v376
        %v384 = vmul.f32 %v329, %v376
        %v385 = vmul.f32 %v330, %v376
        %v386 = vmul.f32 %v331, %v376
        %v387 = vmul.f32 %v332, %v376
        %v388 = vmul.f32 %v333, %v376
        %v389 = vmul.f32 %v334, %v376
        %v390 = vmul.f32 %v335, %v376
        %v391 = vmul.f32 %v336, %v376
        %v392 = vmul.f32 %v337, %v376
        %v393 = vmul.f32 %v338, %v376
        %v394 = vld [vmem:[%s4] sm:$0x1]
        %v396 = vlaneseq
        %v397 = vshrl.u32 %v396, 7
        %v398 = vsub.s32 0, %v397
        %v399 = vrot.slane %v394, %v398
        %v401 = vmul.f32 %v339, %v399
        %v402 = vmul.f32 %v340, %v399
        %v403 = vmul.f32 %v341, %v399
        %v404 = vmul.f32 %v342, %v399
        %v405 = vmul.f32 %v343, %v399
        %v406 = vmul.f32 %v344, %v399
        %v407 = vmul.f32 %v345, %v399
        %v408 = vmul.f32 %v346, %v399
        %v409 = vmul.f32 %v347, %v399
        %v410 = vmul.f32 %v348, %v399
        %v411 = vmul.f32 %v349, %v399
        %v412 = vmul.f32 %v350, %v399
        %v413 = vmul.f32 %v351, %v399
        %v414 = vmul.f32 %v352, %v399
        %v415 = vmul.f32 %v353, %v399
        %v416 = vmul.f32 %v354, %v399
        %v417 = vadd.f32 %v378, %v401
        %v418 = vadd.f32 %v379, %v402
        %v419 = vadd.f32 %v380, %v403
        %v420 = vadd.f32 %v381, %v404
        %v421 = vadd.f32 %v382, %v405
        %v422 = vadd.f32 %v383, %v406
        %v423 = vadd.f32 %v384, %v407
        %v424 = vadd.f32 %v385, %v408
        %v425 = vadd.f32 %v386, %v409
        %v426 = vadd.f32 %v387, %v410
        %v427 = vadd.f32 %v388, %v411
        %v428 = vadd.f32 %v389, %v412
        %v429 = vadd.f32 %v390, %v413
        %v430 = vadd.f32 %v391, %v414
        %v431 = vadd.f32 %v392, %v415
        %v432 = vadd.f32 %v393, %v416
        %v433 = vld [vmem:[%s5] sm:$0x1]
        %v435 = vlaneseq
        %v436 = vshrl.u32 %v435, 7
        %v437 = vsub.s32 0, %v436
        %v438 = vrot.slane %v433, %v437
        %v440 = vmul.f32 %v355, %v438
        %v441 = vmul.f32 %v356, %v438
        %v442 = vmul.f32 %v357, %v438
        %v443 = vmul.f32 %v358, %v438
        %v444 = vmul.f32 %v359, %v438
        %v445 = vmul.f32 %v360, %v438
        %v446 = vmul.f32 %v361, %v438
        %v447 = vmul.f32 %v362, %v438
        %v448 = vmul.f32 %v363, %v438
        %v449 = vmul.f32 %v364, %v438
        %v450 = vmul.f32 %v365, %v438
        %v451 = vmul.f32 %v366, %v438
        %v452 = vmul.f32 %v367, %v438
        %v453 = vmul.f32 %v368, %v438
        %v454 = vmul.f32 %v369, %v438
        %v455 = vmul.f32 %v370, %v438
        %v456 = vadd.f32 %v417, %v440
        %v457 = vadd.f32 %v418, %v441
        %v458 = vadd.f32 %v419, %v442
        %v459 = vadd.f32 %v420, %v443
        %v460 = vadd.f32 %v421, %v444
        %v461 = vadd.f32 %v422, %v445
        %v462 = vadd.f32 %v423, %v446
        %v463 = vadd.f32 %v424, %v447
        %v464 = vadd.f32 %v425, %v448
        %v465 = vadd.f32 %v426, %v449
        %v466 = vadd.f32 %v427, %v450
        %v467 = vadd.f32 %v428, %v451
        %v468 = vadd.f32 %v429, %v452
        %v469 = vadd.f32 %v430, %v453
        %v470 = vadd.f32 %v431, %v454
        %v471 = vadd.f32 %v432, %v455
        %vm472 = vcmask 261120
        %v473 = vsel %vm472, %v456, 0.0
        %474 = vadd.xlane.f32.xlu0 %v473
        %v475 = vpop.xlane.xlu0 %474
        %v476 = vsel %vm472, %v457, 0.0
        %477 = vadd.xlane.f32.xlu0 %v476
        %v478 = vpop.xlane.xlu0 %477
        %v479 = vsel %vm472, %v458, 0.0
        %480 = vadd.xlane.f32.xlu0 %v479
        %v481 = vpop.xlane.xlu0 %480
        %v482 = vsel %vm472, %v459, 0.0
        %483 = vadd.xlane.f32.xlu0 %v482
        %v484 = vpop.xlane.xlu0 %483
        %v485 = vsel %vm472, %v460, 0.0
        %486 = vadd.xlane.f32.xlu0 %v485
        %v487 = vpop.xlane.xlu0 %486
        %v488 = vsel %vm472, %v461, 0.0
        %489 = vadd.xlane.f32.xlu0 %v488
        %v490 = vpop.xlane.xlu0 %489
        %v491 = vsel %vm472, %v462, 0.0
        %492 = vadd.xlane.f32.xlu0 %v491
        %v493 = vpop.xlane.xlu0 %492
        %v494 = vsel %vm472, %v463, 0.0
        %495 = vadd.xlane.f32.xlu0 %v494
        %v496 = vpop.xlane.xlu0 %495
        %v497 = vsel %vm472, %v464, 0.0
        %498 = vadd.xlane.f32.xlu0 %v497
        %v499 = vpop.xlane.xlu0 %498
        %v500 = vsel %vm472, %v465, 0.0
        %501 = vadd.xlane.f32.xlu0 %v500
        %v502 = vpop.xlane.xlu0 %501
        %v503 = vsel %vm472, %v466, 0.0
        %504 = vadd.xlane.f32.xlu0 %v503
        %v505 = vpop.xlane.xlu0 %504
        %v506 = vsel %vm472, %v467, 0.0
        %507 = vadd.xlane.f32.xlu0 %v506
        %v508 = vpop.xlane.xlu0 %507
        %v509 = vsel %vm472, %v468, 0.0
        %510 = vadd.xlane.f32.xlu0 %v509
        %v511 = vpop.xlane.xlu0 %510
        %v512 = vsel %vm472, %v469, 0.0
        %513 = vadd.xlane.f32.xlu0 %v512
        %v514 = vpop.xlane.xlu0 %513
        %v515 = vsel %vm472, %v470, 0.0
        %516 = vadd.xlane.f32.xlu0 %v515
        %v517 = vpop.xlane.xlu0 %516
        %v518 = vsel %vm472, %v471, 0.0
        %519 = vadd.xlane.f32.xlu0 %v518
        %v520 = vpop.xlane.xlu0 %519
        %s521 = sld [smem:[#allocation2]]
        %v522 = vstv %s521
        %v523 = vadd.f32 %v475, %v522
        %v524 = vadd.f32 %v478, %v522
        %v525 = vadd.f32 %v481, %v522
        %v526 = vadd.f32 %v484, %v522
        %v527 = vadd.f32 %v487, %v522
        %v528 = vadd.f32 %v490, %v522
        %v529 = vadd.f32 %v493, %v522
        %v530 = vadd.f32 %v496, %v522
        %v531 = vadd.f32 %v499, %v522
        %v532 = vadd.f32 %v502, %v522
        %v533 = vadd.f32 %v505, %v522
        %v534 = vadd.f32 %v508, %v522
        %v535 = vadd.f32 %v511, %v522
        %v536 = vadd.f32 %v514, %v522
        %v537 = vadd.f32 %v517, %v522
        %v538 = vadd.f32 %v520, %v522
        %v555 = vlaneseq
        %v556 = vand.u32 %v555, 127
        %v557 = vlaneseq
        %v558 = vshrl.u32 %v557, 7
        %v559 = vsub.s32 %v556, %v558
        %v560 = vrot.slane %v523, %v559
        %v561 = vadd.s32 %v556, 4294967288
        %v562 = vlaneseq
        %v563 = vshrl.u32 %v562, 7
        %v564 = vsub.s32 %v561, %v563
        %v565 = vrot.slane %v524, %v564
        %vm566 = vcmask 130112
        %v567 = vsel %vm566, %v565, %v560
        %v568 = vadd.s32 %v556, 4294967280
        %v569 = vlaneseq
        %v570 = vshrl.u32 %v569, 7
        %v571 = vsub.s32 %v568, %v570
        %v572 = vrot.slane %v525, %v571
        %vm573 = vcmask 195712
        %v574 = vsel %vm573, %v572, %v567
        %v575 = vadd.s32 %v556, 4294967272
        %v576 = vlaneseq
        %v577 = vshrl.u32 %v576, 7
        %v578 = vsub.s32 %v575, %v577
        %v579 = vrot.slane %v526, %v578
        %vm580 = vcmask 261312
        %v581 = vsel %vm580, %v579, %v574
        %v582 = vadd.s32 %v556, 4294967264
        %v583 = vlaneseq
        %v584 = vshrl.u32 %v583, 7
        %v585 = vsub.s32 %v582, %v584
        %v586 = vrot.slane %v527, %v585
        %vm587 = vcmask 326912
        %v588 = vsel %vm587, %v586, %v581
        %v589 = vadd.s32 %v556, 4294967256
        %v590 = vlaneseq
        %v591 = vshrl.u32 %v590, 7
        %v592 = vsub.s32 %v589, %v591
        %v593 = vrot.slane %v528, %v592
        %vm594 = vcmask 392512
        %v595 = vsel %vm594, %v593, %v588
        %v596 = vadd.s32 %v556, 4294967248
        %v597 = vlaneseq
        %v598 = vshrl.u32 %v597, 7
        %v599 = vsub.s32 %v596, %v598
        %v600 = vrot.slane %v529, %v599
        %vm601 = vcmask 458112
        %v602 = vsel %vm601, %v600, %v595
        %v603 = vadd.s32 %v556, 4294967240
        %v604 = vlaneseq
        %v605 = vshrl.u32 %v604, 7
        %v606 = vsub.s32 %v603, %v605
        %v607 = vrot.slane %v530, %v606
        %vm608 = vcmask 523712
        %v609 = vsel %vm608, %v607, %v602
        %v610 = vadd.s32 %v556, 4294967232
        %v611 = vlaneseq
        %v612 = vshrl.u32 %v611, 7
        %v613 = vsub.s32 %v610, %v612
        %v614 = vrot.slane %v531, %v613
        %vm615 = vcmask 589312
        %v616 = vsel %vm615, %v614, %v609
        %v617 = vadd.s32 %v556, 4294967224
        %v618 = vlaneseq
        %v619 = vshrl.u32 %v618, 7
        %v620 = vsub.s32 %v617, %v619
        %v621 = vrot.slane %v532, %v620
        %vm622 = vcmask 654912
        %v623 = vsel %vm622, %v621, %v616
        %v624 = vadd.s32 %v556, 4294967216
        %v625 = vlaneseq
        %v626 = vshrl.u32 %v625, 7
        %v627 = vsub.s32 %v624, %v626
        %v628 = vrot.slane %v533, %v627
        %vm629 = vcmask 720512
        %v630 = vsel %vm629, %v628, %v623
        %v631 = vadd.s32 %v556, 4294967208
        %v632 = vlaneseq
        %v633 = vshrl.u32 %v632, 7
        %v634 = vsub.s32 %v631, %v633
        %v635 = vrot.slane %v534, %v634
        %vm636 = vcmask 786112
        %v637 = vsel %vm636, %v635, %v630
        %v638 = vadd.s32 %v556, 4294967200
        %v639 = vlaneseq
        %v640 = vshrl.u32 %v639, 7
        %v641 = vsub.s32 %v638, %v640
        %v642 = vrot.slane %v535, %v641
        %vm643 = vcmask 851712
        %v644 = vsel %vm643, %v642, %v637
        %v645 = vadd.s32 %v556, 4294967192
        %v646 = vlaneseq
        %v647 = vshrl.u32 %v646, 7
        %v648 = vsub.s32 %v645, %v647
        %v649 = vrot.slane %v536, %v648
        %vm650 = vcmask 917312
        %v651 = vsel %vm650, %v649, %v644
        %v652 = vadd.s32 %v556, 4294967184
        %v653 = vlaneseq
        %v654 = vshrl.u32 %v653, 7
        %v655 = vsub.s32 %v652, %v654
        %v656 = vrot.slane %v537, %v655
        %vm657 = vcmask 982912
        %v658 = vsel %vm657, %v656, %v651
        %v659 = vadd.s32 %v556, 4294967176
        %v660 = vlaneseq
        %v661 = vshrl.u32 %v660, 7
        %v662 = vsub.s32 %v659, %v661
        %v663 = vrot.slane %v538, %v662
        %vm664 = vcmask 1048512
        %v665 = vsel %vm664, %v663, %v658
        %667 = vst [vmem:[%s304] sm:$0x1] %v665
        %s668 = sand.u32 %s192, 1
        %s669 = scalar_lea.sflag [#allocation4], %s668
        %s670 = sand.u32 %s192, 1
        %s671 = scalar_lea.vmem [#allocation3], %s670
        // Predicated region
        $region49: #{tpu_custom_call.1} parent=47 // pred_check
          %p672 = pneg %p202
        $region50: #{tpu_custom_call.1} parent=47 // pred_check_branch
          %674 = sbr.rel (%p672) target = $region52
        $region51: #{tpu_custom_call.1} parent=47 // pred_region
          %s676 = ssub.s32 16, 16
          %677 = vsyncadd %s669, %s676
          %s678 = smul.addr %s22, 16
          %s679 = scalar_lea.hbm %s7, %s678
          %s681 = sshll.u32 %s671, 4
          %s682 = int_to_ptr.vmem [resolvable:$true] %s681
          %684 = dma.vmem_to_hbm [thread:$0]  %s682, 16, %s679, %s669
        $region52: #{tpu_custom_call.1} parent=47 // pred_fallthru
          _
      $region48: #{tpu_custom_call.1} parent=5 // pred_fallthru
        _
      %p685 = scmp.le.s32.totalorder 2, %s17
      // Predicated region
      $region53: #{tpu_custom_call.1} parent=5 // pred_check
        %p686 = pneg %p685
      $region54: #{tpu_custom_call.1} parent=5 // pred_check_branch
        %688 = sbr.rel (%p686) target = $region56
      $region55: #{tpu_custom_call.1} parent=5 // pred_region
        %s689 = ssub.s32 %s17, 2
        // Predicated region
        $region57: #{tpu_custom_call.1} parent=55 // pred_check
          %p690 = pneg %p208
        $region58: #{tpu_custom_call.1} parent=55 // pred_check_branch
          %692 = sbr.rel (%p690) target = $region60
        $region59: #{tpu_custom_call.1} parent=55 // pred_region
          %s693 = sand.u32 %s193, 1
          %s694 = scalar_lea.sflag [#allocation4], %s693
          %s695 = sand.u32 %s193, 1
          %s696 = scalar_lea.vmem [#allocation3], %s695
          %697 = dma.done %s694, 16
        $region60: #{tpu_custom_call.1} parent=55 // pred_fallthru
          _
      $region56: #{tpu_custom_call.1} parent=5 // pred_fallthru
        _
    $region6: #{tpu_custom_call.1} parent=1 // loop_footer
      %s21 = sadd.s32 1, %s17
    $region7: #{tpu_custom_call.1} parent=1 // loop_footer_branch
      %16 = sbr.rel target = $region3
    $region8: #{tpu_custom_call.1} parent=1 // loop_exit
      _
    %698 = vsyncpa [#allocation4], 1
    %s699 = scalar_lea.sflag [#allocation4], 1
    %700 = vsyncpa %s699, 1

</llo_original>
